<compile_context>
chip_gen: v7x
topology: tpu7x:2x2x1
jax: 0.10.0
libtpu: 0.0.40
codegen_flags: <defaults>
</compile_context>

<pallas_src>
import functools

import jax
import jax.numpy as jnp
from jax.experimental import pallas as pl
from jax.experimental.pallas import tpu as pltpu


def _round_up(x, m):
    return ((x + m - 1) // m) * m


def _physical_vmem_bytes():
    """Per-TensorCore VMEM capacity; conservative fallback if the query is unavailable."""
    try:
        info = pltpu.get_tpu_info()
        vmem = getattr(info, "vmem_capacity_bytes", None)
        if vmem:
            return int(vmem)
    except Exception:
        pass
    return 64 * 1024 * 1024  # conservative: v7x-class per-TC VMEM


def _vmem_limit_bytes():
    """Explicit scoped-VMEM limit passed to Mosaic (generation aware)."""
    phys = _physical_vmem_bytes()
    if phys <= 64 * 1024 * 1024:
        return 40 * 1024 * 1024      # v7x: leave headroom under the 64 MiB physical VMEM
    return 64 * 1024 * 1024          # v5e / v6e: well above the 16/32 MiB defaults, under 128 MiB


def _choose_batch_tile(N, C, HW, x_itemsize, Kp, vmem_limit):
    """Largest batch tile (multiple of 8) whose double-buffered blocks fit the VMEM limit,
    capped so the batch grid keeps several steps (pipelining + v7x megacore)."""
    # Padded on-chip layout: sublane multiple of 8, lane multiple of 128.
    hw_pad = _round_up(HW, 128)
    c_sub = _round_up(C, 8)
    c_lane = _round_up(C, 128)
    in_row = c_sub * hw_pad * x_itemsize          # feature-map bytes per batch row (VMEM)
    out_row = (c_lane + Kp) * 4                   # feat + logits bytes per batch row (f32)
    fixed = 2 * (c_sub * Kp * 4 + 128 * Kp * 4)   # double-buffered weight + bias (padded)
    budget = int(vmem_limit * 0.85)               # headroom for Mosaic internals
    avail = max(budget - fixed, 1 << 20)
    per_row = 2 * (in_row + out_row)              # inputs and outputs double-buffered
    tn = max(8, (avail // per_row) // 8 * 8)
    # Keep >= 2 (ideally >= 4) grid steps when N allows: shards across v7x's two
    # TensorCores and overlaps the dominant x DMA with compute on every generation.
    if N >= 32:
        tn = min(tn, max(8, _round_up(-(-N // 4), 8)))
    elif N >= 16:
        tn = min(tn, max(8, _round_up(-(-N // 2), 8)))
    return min(tn, N)


def head_kernel(x_ref, w_ref, b_ref, feat_ref, logits_ref):
    # x_ref:      (TN, C, HW) input dtype -- backbone feature map tile, native NCHW layout
    # w_ref:      (C, Kp)     f32         -- classifier weight (transposed, K zero-padded)
    # b_ref:      (1, Kp)     f32         -- classifier bias   (K zero-padded)
    # feat_ref:   (TN, C)     f32         -- pooled + relu features (first output)
    # logits_ref: (TN, Kp)    f32         -- classifier logits      (second output)
    inv_hw = 1.0 / x_ref.shape[-1]
    # adaptive_avg_pool2d(., 1): single-pass lane reduce with f32 accumulation
    # (no materialized f32 copy of the full tile).
    pooled = jnp.sum(x_ref[...], axis=-1, dtype=jnp.float32) * inv_hw
    feat = jnp.maximum(pooled, 0.0)               # F.relu(..., inplace=True)
    feat_ref[...] = feat
    # Classifier matmul kept in f32 (tiny FLOP count next to the HBM-bound pool).
    logits_ref[...] = (
        jnp.dot(feat, w_ref[...], preferred_element_type=jnp.float32) + b_ref[...]
    )


def prepare_classifier_params(weight, bias):
    """One-time parameter prep (hoisted out of the per-call path).
    weight: (K, C) torch nn.Linear layout; bias: (K,).  Kept in f32."""
    K, C = weight.shape
    Kp = _round_up(max(K, 128), 128)              # lane-dense logits output
    wt = jnp.zeros((C, Kp), dtype=jnp.float32)
    wt = wt.at[:, :K].set(jnp.transpose(weight).astype(jnp.float32))
    b2 = jnp.zeros((1, Kp), dtype=jnp.float32)
    b2 = b2.at[:, :K].set(bias.astype(jnp.float32)[None, :])
    return wt, b2


@functools.partial(jax.jit, static_argnames=("num_classes", "batch_tile"))
def network_head(feature_map, wt, b2, *, num_classes, batch_tile=None):
    """feature_map: (N, C, H, W) NCHW (PyTorch backbone output), f32 or bf16 (streams
    straight into the kernel, no wrapper transpose or upcast).
    wt, b2: outputs of prepare_classifier_params.
    batch_tile: optional override of the batch tile (testing / tuning)."""
    N, C, H, W = feature_map.shape
    HW = H * W
    Kp = wt.shape[1]

    # Native layout: (N, C, H, W) -> (N, C, HW) is a free contiguous reshape; the kernel
    # reduces over the HW lane axis, so no extra HBM pass over the feature map.
    x = feature_map.reshape(N, C, HW)

    vmem_limit = _vmem_limit_bytes()
    if batch_tile is not None:
        tn = min(int(batch_tile), N)
    else:
        tn = _choose_batch_tile(N, C, HW, x.dtype.itemsize, Kp, vmem_limit)
    grid = (pl.cdiv(N, tn),)

    cost = pl.CostEstimate(
        flops=2 * N * C * Kp + N * HW * C,
        transcendentals=0,
        bytes_accessed=(N * HW * C * x.dtype.itemsize          # single read of the feature map
                        + C * Kp * 4 + Kp * 4                  # classifier params
                        + N * (C + Kp) * 4),                   # outputs
    )

    feat, logits_p = pl.pallas_call(
        head_kernel,
        out_shape=(
            jax.ShapeDtypeStruct((N, C), jnp.float32),
            jax.ShapeDtypeStruct((N, Kp), jnp.float32),
        ),
        grid_spec=pltpu.PrefetchScalarGridSpec(
            num_scalar_prefetch=0,
            grid=grid,
            in_specs=[
                pl.BlockSpec((tn, C, HW), lambda i: (i, 0, 0)),   # streamed, pipelined
                pl.BlockSpec((C, Kp), lambda i: (0, 0)),          # grid-invariant (VMEM-resident)
                pl.BlockSpec((1, Kp), lambda i: (0, 0)),          # grid-invariant (VMEM-resident)
            ],
            out_specs=[
                pl.BlockSpec((tn, C), lambda i: (i, 0)),
                pl.BlockSpec((tn, Kp), lambda i: (i, 0)),
            ],
        ),
        compiler_params=pltpu.CompilerParams(
            dimension_semantics=("parallel",),      # batch tiles shard across TCs on v7x
            vmem_limit_bytes=vmem_limit,
        ),
        cost_estimate=cost,
    )(x, wt, b2)

    return feat, logits_p[:, :num_classes]


if __name__ == "__main__":
    # Small, deterministic synthetic shapes (stand-in for ResNet18's (N, 512, 7, 7) output).
    N, C, H, W = 2, 32, 8, 8       # backbone feature map: (N, dim, H, W)
    K = 16                         # num_classes

    key = jax.random.PRNGKey(0)
    k_fm, k_w, k_b = jax.random.split(key, 3)

    feature_map = jax.random.normal(k_fm, (N, C, H, W), dtype=jnp.float32)

    # nn.Linear default init: U(-1/sqrt(dim), 1/sqrt(dim)), deterministic here.
    bound = 1.0 / (C ** 0.5)
    weight = jax.random.uniform(k_w, (K, C), dtype=jnp.float32, minval=-bound, maxval=bound)
    bias = jax.random.uniform(k_b, (K,), dtype=jnp.float32, minval=-bound, maxval=bound)

    wt, b2 = prepare_classifier_params(weight, bias)

    # ---- f32 path (matches the PyTorch module's numerics) ----
    feat, logits = network_head(feature_map, wt, b2, num_classes=K)
    feat, logits = jax.block_until_ready(feat), jax.block_until_ready(logits)

    feat_ref = jnp.maximum(feature_map.mean(axis=(2, 3)), 0.0)
    logits_ref = feat_ref @ weight.T + bias
    assert feat.shape == (N, C) and logits.shape == (N, K)
    assert jnp.allclose(feat, feat_ref, atol=1e-5, rtol=1e-5)
    assert jnp.allclose(logits, logits_ref, atol=1e-5, rtol=1e-5)

    # ---- bf16 path (backbone-native dtype on TPU: halves the dominant HBM traffic).
    #      Pooling accumulates in f32 and the classifier matmul stays in f32. ----
    fm_bf16 = feature_map.astype(jnp.bfloat16)
    feat16, logits16 = network_head(fm_bf16, wt, b2, num_classes=K)
    feat16, logits16 = jax.block_until_ready(feat16), jax.block_until_ready(logits16)

    feat16_ref = jnp.maximum(fm_bf16.astype(jnp.float32).mean(axis=(2, 3)), 0.0)
    logits16_ref = feat16_ref @ weight.T + bias
    assert feat16.shape == (N, C) and logits16.shape == (N, K)
    assert jnp.allclose(feat16, feat16_ref, atol=1e-4, rtol=1e-4)
    assert jnp.allclose(logits16, logits16_ref, atol=1e-3, rtol=1e-3)

    # ---- partial last tile path: N not a multiple of the batch tile (masked stores) ----
    N3 = 12
    fm3 = jax.random.normal(jax.random.PRNGKey(1), (N3, C, H, W), dtype=jnp.float32)
    feat3, logits3 = network_head(fm3, wt, b2, num_classes=K, batch_tile=8)  # grid=(2,), last tile=4
    feat3, logits3 = jax.block_until_ready(feat3), jax.block_until_ready(logits3)

    feat3_ref = jnp.maximum(fm3.mean(axis=(2, 3)), 0.0)
    logits3_ref = feat3_ref @ weight.T + bias
    assert feat3.shape == (N3, C) and logits3.shape == (N3, K)
    assert jnp.allclose(feat3, feat3_ref, atol=1e-5, rtol=1e-5)
    assert jnp.allclose(logits3, logits3_ref, atol=1e-5, rtol=1e-5)

    print("KERNEL_OK")
</pallas_src>

<mosaic_0001>
module attributes {stable_mosaic.version = 11 : i64} {
  func.func @head_kernel(%arg0: i32, %arg1: memref<2x32x64xf32, #tpu.memory_space<vmem>>, %arg2: memref<32x128xf32, #tpu.memory_space<vmem>>, %arg3: memref<1x128xf32, #tpu.memory_space<vmem>>, %arg4: memref<2x32xf32, #tpu.memory_space<vmem>>, %arg5: memref<2x128xf32, #tpu.memory_space<vmem>>) attributes {dimension_semantics = [#tpu.dimension_semantics<parallel>], iteration_bounds = array<i64: 1>, scalar_prefetch = 0 : i64, scratch_operands = 0 : i64, tpu.core_type = #tpu.core_type<tc>, window_params = [{transform_indices = @transform_0, window_bounds = array<i64: 2, 32, 64>}, {pipeline_mode = #tpu.pipeline_mode<synchronous>, transform_indices = @transform_1, window_bounds = array<i64: 32, 128>}, {pipeline_mode = #tpu.pipeline_mode<synchronous>, transform_indices = @transform_2, window_bounds = array<i64: 1, 128>}, {transform_indices = @transform_3, window_bounds = array<i64: 2, 32>}, {transform_indices = @transform_4, window_bounds = array<i64: 2, 128>}]} {
    %c0 = arith.constant 0 : index
    %c0_0 = arith.constant 0 : index
    %c0_1 = arith.constant 0 : index
    %0 = vector.load %arg1[%c0, %c0_0, %c0_1] : memref<2x32x64xf32, #tpu.memory_space<vmem>>, vector<2x32x64xf32>
    %cst = arith.constant dense<0.000000e+00> : vector<2x32xf32>
    %1 = vector.multi_reduction <add>, %0, %cst [2] : vector<2x32x64xf32> to vector<2x32xf32>
    %cst_2 = arith.constant 1.562500e-02 : f32
    %2 = vector.broadcast %cst_2 : f32 to vector<2x32xf32>
    %3 = arith.mulf %1, %2 : vector<2x32xf32>
    %cst_3 = arith.constant 0.000000e+00 : f32
    %4 = vector.broadcast %cst_3 : f32 to vector<2x32xf32>
    %5 = arith.maximumf %3, %4 : vector<2x32xf32>
    %c0_4 = arith.constant 0 : index
    %c0_5 = arith.constant 0 : index
    %6 = vector.load %arg4[%c0_4, %c0_5] : memref<2x32xf32, #tpu.memory_space<vmem>>, vector<2x32xf32>
    tpu.vector_store %arg4[%c0_4, %c0_5], %5 {strides = array<i32>} : memref<2x32xf32, #tpu.memory_space<vmem>>, vector<2x32xf32>,
    %c0_6 = arith.constant 0 : index
    %c0_7 = arith.constant 0 : index
    %7 = vector.load %arg2[%c0_6, %c0_7] : memref<32x128xf32, #tpu.memory_space<vmem>>, vector<32x128xf32>
    %cst_8 = arith.constant dense<0.000000e+00> : vector<2x128xf32>
    %8 = tpu.matmul %5, %7, %cst_8 {dimension_numbers = #tpu.dot_dimension_numbers<[1], [0], [0], [1], [0, 0, 1, 1], [], []>} : vector<2x32xf32>, vector<32x128xf32>, vector<2x128xf32> -> vector<2x128xf32>
    %c0_9 = arith.constant 0 : index
    %c0_10 = arith.constant 0 : index
    %9 = vector.load %arg3[%c0_9, %c0_10] : memref<1x128xf32, #tpu.memory_space<vmem>>, vector<1x128xf32>
    %10 = vector.broadcast %9 : vector<1x128xf32> to vector<2x128xf32>
    %11 = arith.addf %8, %10 : vector<2x128xf32>
    %c0_11 = arith.constant 0 : index
    %c0_12 = arith.constant 0 : index
    %12 = vector.load %arg5[%c0_11, %c0_12] : memref<2x128xf32, #tpu.memory_space<vmem>>, vector<2x128xf32>
    tpu.vector_store %arg5[%c0_11, %c0_12], %11 {strides = array<i32>} : memref<2x128xf32, #tpu.memory_space<vmem>>, vector<2x128xf32>,
    return
  }
  func.func @transform_0(%arg0: i32) -> (i32, i32, i32) {
    %c0_i32 = arith.constant 0 : i32
    %c0_i32_0 = arith.constant 0 : i32
    %c0_i32_1 = arith.constant 0 : i32
    return %arg0, %c0_i32, %c0_i32_0 : i32, i32, i32
  }
  func.func @transform_1(%arg0: i32) -> (i32, i32) {
    %c0_i32 = arith.constant 0 : i32
    %c0_i32_0 = arith.constant 0 : i32
    %c0_i32_1 = arith.constant 0 : i32
    return %c0_i32, %c0_i32_0 : i32, i32
  }
  func.func @transform_2(%arg0: i32) -> (i32, i32) {
    %c0_i32 = arith.constant 0 : i32
    %c0_i32_0 = arith.constant 0 : i32
    %c0_i32_1 = arith.constant 0 : i32
    return %c0_i32, %c0_i32_0 : i32, i32
  }
  func.func @transform_3(%arg0: i32) -> (i32, i32) {
    %c0_i32 = arith.constant 0 : i32
    %c0_i32_0 = arith.constant 0 : i32
    return %arg0, %c0_i32 : i32, i32
  }
  func.func @transform_4(%arg0: i32) -> (i32, i32) {
    %c0_i32 = arith.constant 0 : i32
    %c0_i32_0 = arith.constant 0 : i32
    return %arg0, %c0_i32 : i32, i32
  }
}

</mosaic_0001>

<llo_original>
// kernel: network_head.1
$region0: #{network_head.1}
  #allocation0 [shape = 'u32[]', space=smem, size = 0x4, offset = 0x4, fixed_abs, tag = 'smem constant byte address 0x4 - core index']
  #allocation1 [shape = 'u32[144,128]{1,0:T(1,128)}', space=vmem, size = 0x12000, scoped, tag = 'internal scratch']
  %s0 = inlined_call_operand.vmem [shape: f32[2,32,64], index: 0, kind: input, shape index: {}]
  %s1 = inlined_call_operand.vmem [shape: f32[32,128], index: 1, kind: input, shape index: {}]
  %s2 = inlined_call_operand.vmem [shape: f32[1,128], index: 2, kind: input, shape index: {}]
  %s3 = inlined_call_operand.hbm [shape: f32[2,32], index: 3, kind: output, shape index: {0}]
  %s4 = inlined_call_operand.hbm [shape: f32[2,128], index: 4, kind: output, shape index: {1}]
  %5 = xla_tuple %s3, %s4
  %s6 = sld [smem:[#allocation0]]
  $region30: #{network_head.1} parent=0
    _
  %s8 = ssub.s32 1, %s6
  %s9 = scalar_select 0, %s8, %s6
  $region1: #{network_head.1} parent=0
    #allocation2 [shape = 'u8[1024]{0}', space=vmem, size = 0x400, scoped, tag = 'output window, operand 0, single buffered']
    #allocation3 [shape = 's32[1]{0}', space=sflag, size = 0x4, scoped, tag = 'scoped memory for network_head.1']
    #allocation4 [shape = 'u8[1024]{0}', space=vmem, size = 0x400, scoped, tag = 'output window, operand 1, single buffered']
    #allocation5 [shape = 's32[1]{0}', space=sflag, size = 0x4, scoped, tag = 'scoped memory for network_head.1']
    %10 = vsyncpa [#allocation3], 0
    %11 = vsyncpa [#allocation5], 0
    // Predicated region
    $region2: #{network_head.1} parent=1 // pred_check
      _
    $region3: #{network_head.1} parent=1 // pred_check_branch
      %13 = sbr.rel (0) target = $region5
    $region4: #{network_head.1} parent=1 // pred_region
      _
    $region5: #{network_head.1} parent=1 // pred_fallthru
      _
    // Predicated region
    $region6: #{network_head.1} parent=1 // pred_check
      _
    $region7: #{network_head.1} parent=1 // pred_check_branch
      %15 = sbr.rel (0) target = $region9
    $region8: #{network_head.1} parent=1 // pred_region
      _
    $region9: #{network_head.1} parent=1 // pred_fallthru
      _
    // Predicated region
    $region10: #{network_head.1} parent=1 // pred_check
      _
    $region11: #{network_head.1} parent=1 // pred_check_branch
      %17 = sbr.rel (0) target = $region13
    $region12: #{network_head.1} parent=1 // pred_region
      _
    $region13: #{network_head.1} parent=1 // pred_fallthru
      _
    %v18 = vld [vmem:[%s0] sm:$0xff]
    %v19 = vld [vmem:[%s0 + $0x8] sm:$0xff]
    %v20 = vld [vmem:[%s0 + $0x10] sm:$0xff]
    %v21 = vld [vmem:[%s0 + $0x18] sm:$0xff]
    %v22 = vld [vmem:[%s0 + $0x20] sm:$0xff]
    %v23 = vld [vmem:[%s0 + $0x28] sm:$0xff]
    %v24 = vld [vmem:[%s0 + $0x30] sm:$0xff]
    %v25 = vld [vmem:[%s0 + $0x38] sm:$0xff]
    %vm26 = vcmask 523264
    %v27 = vsel %vm26, %v18, 0.0
    %28 = vadd.xlane.f32.xlu0 %v27
    %v29 = vpop.xlane.xlu0 %28
    %v30 = vsel %vm26, %v19, 0.0
    %31 = vadd.xlane.f32.xlu0 %v30
    %v32 = vpop.xlane.xlu0 %31
    %v33 = vsel %vm26, %v20, 0.0
    %34 = vadd.xlane.f32.xlu0 %v33
    %v35 = vpop.xlane.xlu0 %34
    %v36 = vsel %vm26, %v21, 0.0
    %37 = vadd.xlane.f32.xlu0 %v36
    %v38 = vpop.xlane.xlu0 %37
    %v39 = vsel %vm26, %v22, 0.0
    %40 = vadd.xlane.f32.xlu0 %v39
    %v41 = vpop.xlane.xlu0 %40
    %v42 = vsel %vm26, %v23, 0.0
    %43 = vadd.xlane.f32.xlu0 %v42
    %v44 = vpop.xlane.xlu0 %43
    %v45 = vsel %vm26, %v24, 0.0
    %46 = vadd.xlane.f32.xlu0 %v45
    %v47 = vpop.xlane.xlu0 %46
    %v48 = vsel %vm26, %v25, 0.0
    %49 = vadd.xlane.f32.xlu0 %v48
    %v50 = vpop.xlane.xlu0 %49
    %v51 = vmul.f32 %v29, 0.015625
    %v52 = vmul.f32 %v32, 0.015625
    %v53 = vmul.f32 %v35, 0.015625
    %v54 = vmul.f32 %v38, 0.015625
    %v55 = vmul.f32 %v41, 0.015625
    %v56 = vmul.f32 %v44, 0.015625
    %v57 = vmul.f32 %v47, 0.015625
    %v58 = vmul.f32 %v50, 0.015625
    %v59 = vmax.f32 %v51, 0.0
    %v60 = vmax.f32 %v52, 0.0
    %v61 = vmax.f32 %v53, 0.0
    %v62 = vmax.f32 %v54, 0.0
    %v63 = vmax.f32 %v55, 0.0
    %v64 = vmax.f32 %v56, 0.0
    %v65 = vmax.f32 %v57, 0.0
    %v66 = vmax.f32 %v58, 0.0
    %v75 = vlaneseq
    %v76 = vand.u32 %v75, 127
    %v77 = vlaneseq
    %v78 = vshrl.u32 %v77, 7
    %v79 = vsub.s32 %v76, %v78
    %v80 = vrot.slane %v59, %v79
    %v81 = vadd.s32 %v76, 4294967288
    %v82 = vlaneseq
    %v83 = vshrl.u32 %v82, 7
    %v84 = vsub.s32 %v81, %v83
    %v85 = vrot.slane %v60, %v84
    %vm86 = vcmask 130112
    %v87 = vsel %vm86, %v85, %v80
    %v88 = vadd.s32 %v76, 4294967280
    %v89 = vlaneseq
    %v90 = vshrl.u32 %v89, 7
    %v91 = vsub.s32 %v88, %v90
    %v92 = vrot.slane %v61, %v91
    %vm93 = vcmask 195712
    %v94 = vsel %vm93, %v92, %v87
    %v95 = vadd.s32 %v76, 4294967272
    %v96 = vlaneseq
    %v97 = vshrl.u32 %v96, 7
    %v98 = vsub.s32 %v95, %v97
    %v99 = vrot.slane %v62, %v98
    %vm100 = vcmask 261312
    %v101 = vsel %vm100, %v99, %v94
    %v102 = vlaneseq
    %v103 = vshrl.u32 %v102, 7
    %v104 = vsub.s32 %v76, %v103
    %v105 = vrot.slane %v63, %v104
    %v106 = vlaneseq
    %v107 = vshrl.u32 %v106, 7
    %v108 = vsub.s32 %v81, %v107
    %v109 = vrot.slane %v64, %v108
    %v110 = vsel %vm86, %v109, %v105
    %v111 = vlaneseq
    %v112 = vshrl.u32 %v111, 7
    %v113 = vsub.s32 %v88, %v112
    %v114 = vrot.slane %v65, %v113
    %v115 = vsel %vm93, %v114, %v110
    %v116 = vlaneseq
    %v117 = vshrl.u32 %v116, 7
    %v118 = vsub.s32 %v95, %v117
    %v119 = vrot.slane %v66, %v118
    %v120 = vsel %vm100, %v119, %v115
    %vm121 = vcmask 1041409
    %v122 = vsel %vm121, %v120, %v101
    %vm124 = vcmask 254976
    %125 = vst.msk [vmem:[#allocation2] sm:$0x3] %vm124, %v122
    %v126 = vld [vmem:[%s1] sm:$0xff]
    %v127 = vld [vmem:[%s1 + $0x8] sm:$0xff]
    %v128 = vld [vmem:[%s1 + $0x10] sm:$0xff]
    %v129 = vld [vmem:[%s1 + $0x18] sm:$0xff]
    %v130 = vld [vmem:[%s2] sm:$0x1]
    %v132 = vlaneseq
    %v133 = vshrl.u32 %v132, 7
    %v134 = vsub.s32 0, %v133
    %v135 = vrot.slane %v130, %v134
    %vm137 = vcmask 261120
    %v138 = vsel %vm137, %v122, 0
    %140 = vmatprep.subr.mxu0 0.0
    %141 = vmatpush1.msra.mxu0 %v126
    %142 = vmatprep.subr.mxu0 0.0
    %143 = vmatpush1.msra.mxu0 %v127
    %144 = vmatprep.subr.mxu0 0.0
    %145 = vmatpush1.msra.mxu0 %v128
    %146 = vmatprep.subr.mxu0 0.0
    %147 = vmatpush1.msra.mxu0 %v129
    %148 = vmatprep.subr.mxu0 0.0
    %149 = vmatpush1.msra.mxu0 0.0
    %150 = vmatprep.subr.mxu0 0.0
    %151 = vmatpush1.msra.mxu0 0.0
    %152 = vmatprep.subr.mxu0 0.0
    %153 = vmatpush1.msra.mxu0 0.0
    %154 = vmatprep.subr.mxu0 0.0
    %155 = vmatpush1.msra.mxu0 0.0
    %156 = vmatprep.subr.mxu0 0.0
    %157 = vmatpush1.msra.mxu0 0.0
    %158 = vmatprep.subr.mxu0 0.0
    %159 = vmatpush1.msra.mxu0 0.0
    %160 = vmatprep.subr.mxu0 0.0
    %161 = vmatpush1.msra.mxu0 0.0
    %162 = vmatprep.subr.mxu0 0.0
    %163 = vmatpush1.msra.mxu0 0.0
    %164 = vmatprep.subr.mxu0 0.0
    %165 = vmatpush1.msra.mxu0 0.0
    %166 = vmatprep.subr.mxu0 0.0
    %167 = vmatpush1.msra.mxu0 0.0
    %168 = vmatprep.subr.mxu0 0.0
    %169 = vmatpush1.msra.mxu0 0.0
    %170 = vmatprep.subr.mxu0 0.0
    %171 = vmatpush1.msra.mxu0 0.0
    %172 = vmatprep.subr.mxu0 0.0
    %173 = vmatpush1.msra.mxu0 0.0
    %174 = vmatprep.subr.mxu0 0.0
    %175 = vmatpush1.msra.mxu0 0.0
    %176 = vmatprep.subr.mxu0 0.0
    %177 = vmatpush1.msra.mxu0 0.0
    %178 = vmatprep.subr.mxu0 0.0
    %179 = vmatpush1.msra.mxu0 0.0
    %180 = vmatprep.subr.mxu0 0.0
    %181 = vmatpush1.msra.mxu0 0.0
    %182 = vmatprep.subr.mxu0 0.0
    %183 = vmatpush1.msra.mxu0 0.0
    %184 = vmatprep.subr.mxu0 0.0
    %185 = vmatpush1.msra.mxu0 0.0
    %186 = vmatprep.subr.mxu0 0.0
    %187 = vmatpush1.msra.mxu0 0.0
    %188 = vmatprep.subr.mxu0 0.0
    %189 = vmatpush1.msra.mxu0 0.0
    %190 = vmatprep.subr.mxu0 0.0
    %191 = vmatpush1.msra.mxu0 0.0
    %192 = vmatprep.subr.mxu0 0.0
    %193 = vmatpush1.msra.mxu0 0.0
    %194 = vmatprep.subr.mxu0 0.0
    %195 = vmatpush1.msra.mxu0 0.0
    %196 = vmatprep.subr.mxu0 0.0
    %197 = vmatpush1.msra.mxu0 0.0
    %198 = vmatprep.subr.mxu0 0.0
    %199 = vmatpush1.msra.mxu0 0.0
    %200 = vmatprep.subr.mxu0 0.0
    %201 = vmatpush1.msra.mxu0 0.0
    %202 = vmatprep.subr.mxu0 0.0
    %203 = vmatpush1.msra.mxu0 0.0
    %204 = vmatprep.mubr.f32.mxu0 0.0
    %205 = vmatmul.mubr.f32.gmra.mrb[0].mxu0 %v138
    %v206 = vpop.f32.mrb[0].mxu0
    %v207 = vadd.f32 %v135, %v206
    %v208 = vpop.f32.mrb[0].mxu0
    %209 = vdwg.mxu0
    %210 = vst [vmem:[#allocation4] sm:$0x3] %v207
    // Predicated region
    $region14: #{network_head.1} parent=1 // pred_check
      _
    $region15: #{network_head.1} parent=1 // pred_check_branch
      %212 = sbr.rel (0) target = $region17
    $region16: #{network_head.1} parent=1 // pred_region
      %s214 = ssub.s32 32, 32
      %215 = vsyncadd [#allocation3], %s214
      %s217 = sshll.u32 [#allocation2], 4
      %s218 = int_to_ptr.vmem [resolvable:$true] %s217
      %220 = dma.vmem_to_hbm [thread:$0]  %s218, 32, %s3, [#allocation3]
    $region17: #{network_head.1} parent=1 // pred_fallthru
      _
    // Predicated region
    $region18: #{network_head.1} parent=1 // pred_check
      _
    $region19: #{network_head.1} parent=1 // pred_check_branch
      %222 = sbr.rel (0) target = $region21
    $region20: #{network_head.1} parent=1 // pred_region
      %s224 = ssub.s32 32, 32
      %225 = vsyncadd [#allocation5], %s224
      %s227 = sshll.u32 [#allocation4], 4
      %s228 = int_to_ptr.vmem [resolvable:$true] %s227
      %230 = dma.vmem_to_hbm [thread:$0]  %s228, 32, %s4, [#allocation5]
    $region21: #{network_head.1} parent=1 // pred_fallthru
      _
    // Predicated region
    $region22: #{network_head.1} parent=1 // pred_check
      _
    $region23: #{network_head.1} parent=1 // pred_check_branch
      %232 = sbr.rel (0) target = $region25
    $region24: #{network_head.1} parent=1 // pred_region
      %233 = dma.done [#allocation3], 32
    $region25: #{network_head.1} parent=1 // pred_fallthru
      _
    // Predicated region
    $region26: #{network_head.1} parent=1 // pred_check
      _
    $region27: #{network_head.1} parent=1 // pred_check_branch
      %235 = sbr.rel (0) target = $region29
    $region28: #{network_head.1} parent=1 // pred_region
      %236 = dma.done [#allocation5], 32
    $region29: #{network_head.1} parent=1 // pred_fallthru
      _
    %237 = vsyncpa [#allocation3], 1
    %238 = vsyncpa [#allocation5], 1

</llo_original>
